<compile_context>
chip_gen: v5e
topology: v5e:2x2
jax: 0.10.0
libtpu: 0.0.40
codegen_flags: <defaults>
</compile_context>

<pallas_src>
import functools

import jax
import jax.numpy as jnp
from jax.experimental import pallas as pl
from jax.experimental.pallas import tpu as pltpu


def _encoder_precision_kernel(epsilon, batch, n, dz,
                              x_ref, w1_ref, b1_ref, w2_ref, b2_ref,
                              d_out, b_out, p_out):
    """Single invocation: fused MLPs over all B*N rows, vectorized epilogue."""
    # ---- Fused 2-layer MLP for both heads (diag + off-diag), all rows at once.
    h = jnp.dot(x_ref[...], w1_ref[...],
                precision=jax.lax.Precision.HIGHEST,
                preferred_element_type=jnp.float32) + b1_ref[...]
    h = jnp.maximum(h, 0.0)
    o = jnp.dot(h, w2_ref[...],
                precision=jax.lax.Precision.HIGHEST,
                preferred_element_type=jnp.float32) + b2_ref[...]    # (B*N, 2*Dz)

    # ---- Vectorized epilogue: one reshape + one batched minor-dim transpose.
    ot = jnp.swapaxes(o.reshape(batch, n, 2 * dz), -1, -2)   # (B, 2*Dz, N)
    e = jnp.exp(ot[:, :dz, :])                               # (B, Dz, N) diag head
    u = ot[:, dz:, :]                                        # (B, Dz, N) off-diag head

    row = jax.lax.broadcasted_iota(jnp.int32, (n, n), 0)
    col = jax.lax.broadcasted_iota(jnp.int32, (n, n), 1)
    eye_m = (row == col)[None, None, :, :]
    sup_m = (col == row + 1)[None, None, :, :]   # super-diagonal (offset = +1)
    sub_m = (row == col + 1)[None, None, :, :]   # sub-diagonal

    d_mat = jnp.where(eye_m, e[..., :, None], 0.0)                 # diag_embed(exp(.))
    b_mat = d_mat + jnp.where(sup_m, u[..., :, None], 0.0)         # upper bidiagonal B

    # ---- Closed-form tridiagonal P = B^T B + eps*I (no MXU).
    # Column-wise sums of squares of B give d_j^2 + u_{j-1}^2 exactly.
    p_diag = jnp.sum(b_mat * b_mat, axis=-2) + epsilon             # (B, Dz, N)
    du = e * u                                                     # d_j * u_j
    p_mat = (jnp.where(eye_m, p_diag[..., :, None], 0.0)
             + jnp.where(sup_m, du[..., :, None], 0.0)
             + jnp.where(sub_m, du[..., None, :], 0.0))            # (B, Dz, N, N)

    d_out[...] = d_mat
    b_out[...] = b_mat
    p_out[...] = p_mat


def encoder_precision_forward(x, params, epsilon=1e-3):
    """x: (B, N, Dx) float32. params: dict with 'diag' and 'off' 2-layer MLPs."""
    B, N, Dx = x.shape
    w1d, b1d, w2d, b2d = params["diag"]
    w1u, b1u, w2u, b2u = params["off"]
    H = w1d.shape[1]
    Dz = w2d.shape[1]

    # --- fuse the two MLPs on the XLA side: wide layer-1, block-diag layer-2 ---
    w1p = jnp.concatenate([w1d, w1u], axis=1)               # (Dx, 2H)
    b1p = jnp.concatenate([b1d, b1u], axis=1)               # (1, 2H)
    w2p = jnp.zeros((2 * H, 2 * Dz), jnp.float32)
    w2p = w2p.at[:H, :Dz].set(w2d).at[H:, Dz:].set(w2u)     # (2H, 2Dz) block-diagonal
    b2p = jnp.concatenate([b2d, b2u], axis=1)               # (1, 2Dz)

    x2 = x.reshape(B * N, Dx)

    out_shape = tuple(jax.ShapeDtypeStruct((B, Dz, N, N), jnp.float32)
                      for _ in range(3))
    # Whole-array VMEM refs: no grid, no pipelining scaffolding for a single step.
    in_specs = [pl.BlockSpec(memory_space=pltpu.MemorySpace.VMEM) for _ in range(5)]
    out_specs = tuple(pl.BlockSpec(memory_space=pltpu.MemorySpace.VMEM)
                      for _ in range(3))

    flops = (2 * B * N * (Dx * 2 * H + 2 * H * 2 * Dz)   # fused MLP matmuls
             + 8 * B * Dz * N * N)                        # epilogue elementwise/reduce
    bytes_accessed = 4 * (x2.size + w1p.size + b1p.size + w2p.size + b2p.size
                          + 3 * B * Dz * N * N)
    cost = pl.CostEstimate(flops=flops, transcendentals=B * N * Dz,
                           bytes_accessed=bytes_accessed)

    kernel = functools.partial(_encoder_precision_kernel,
                               float(epsilon), B, N, Dz)
    D, Bm, P = pl.pallas_call(
        kernel,
        out_shape=out_shape,
        in_specs=in_specs,
        out_specs=out_specs,
        cost_estimate=cost,
    )(x2, w1p, b1p, w2p, b2p)
    return D, Bm, P


# --------------------------- parameter init (deterministic) ------------------

def _init_linear(key, fan_in, fan_out):
    kw, kb = jax.random.split(key)
    bound = 1.0 / jnp.sqrt(jnp.float32(fan_in))
    w = jax.random.uniform(kw, (fan_in, fan_out), jnp.float32, -bound, bound)
    b = jax.random.uniform(kb, (1, fan_out), jnp.float32, -bound, bound)
    return w, b


def init_params(key, x_dim, z_dim, inter_dim):
    params = {}
    for name in ("diag", "off"):
        key, k1, k2 = jax.random.split(key, 3)
        w1, b1 = _init_linear(k1, x_dim, inter_dim)
        w2, b2 = _init_linear(k2, inter_dim, z_dim)
        params[name] = (w1, b1, w2, b2)
    return params


# --------------------------- plain-JAX reference ----------------------------

def ref_forward(x, params, epsilon=1e-3):
    def mlp(inp, w1, b1, w2, b2):
        h = jax.nn.relu(inp @ w1 + b1)
        return h @ w2 + b2

    N = x.shape[-2]
    d = jnp.swapaxes(mlp(x, *params["diag"]), -1, -2)        # (B, Dz, N)
    u = jnp.swapaxes(mlp(x, *params["off"]), -1, -2)         # (B, Dz, N)
    eye = jnp.eye(N, dtype=jnp.float32)
    D = jnp.exp(d)[..., :, None] * eye                       # diag_embed(exp(.))
    idx = jnp.arange(N - 1)
    U = jnp.zeros_like(D).at[..., idx, idx + 1].set(u[..., :N - 1])
    Bm = D + U
    P = jnp.swapaxes(Bm, -1, -2) @ Bm + epsilon * eye
    return D, Bm, P


# ----------------------------------- main ------------------------------------

if __name__ == "__main__":
    jax.config.update("jax_default_matmul_precision", "highest")

    B, N, Dx, Dz, H = 2, 8, 4, 3, 32   # inter_dim=32, n_layers=2 (module defaults)
    eps = 1e-3

    key = jax.random.PRNGKey(0)
    key, kx, kp = jax.random.split(key, 3)
    x = jax.random.normal(kx, (B, N, Dx), dtype=jnp.float32)
    params = init_params(kp, Dx, Dz, H)

    D, Bm, P = encoder_precision_forward(x, params, epsilon=eps)
    jax.block_until_ready((D, Bm, P))

    D_r, B_r, P_r = ref_forward(x, params, epsilon=eps)
    assert jnp.allclose(D, D_r, rtol=1e-3, atol=1e-3), "D mismatch"
    assert jnp.allclose(Bm, B_r, rtol=1e-3, atol=1e-3), "B mismatch"
    assert jnp.allclose(P, P_r, rtol=1e-3, atol=1e-3), "precision mismatch"

    print("KERNEL_OK")
</pallas_src>

<mosaic_0001>
module attributes {stable_mosaic.version = 11 : i64} {
  func.func @_encoder_precision_kernel(%arg0: memref<16x4xf32, #tpu.memory_space<vmem>>, %arg1: memref<4x64xf32, #tpu.memory_space<vmem>>, %arg2: memref<1x64xf32, #tpu.memory_space<vmem>>, %arg3: memref<64x6xf32, #tpu.memory_space<vmem>>, %arg4: memref<1x6xf32, #tpu.memory_space<vmem>>, %arg5: memref<2x3x8x8xf32, #tpu.memory_space<vmem>>, %arg6: memref<2x3x8x8xf32, #tpu.memory_space<vmem>>, %arg7: memref<2x3x8x8xf32, #tpu.memory_space<vmem>>) attributes {dimension_semantics = [], scalar_prefetch = 0 : i64, scratch_operands = 0 : i64, tpu.core_type = #tpu.core_type<tc>} {
    %c0 = arith.constant 0 : index
    %c0_0 = arith.constant 0 : index
    %0 = vector.load %arg0[%c0, %c0_0] : memref<16x4xf32, #tpu.memory_space<vmem>>, vector<16x4xf32>
    %c0_1 = arith.constant 0 : index
    %c0_2 = arith.constant 0 : index
    %1 = vector.load %arg1[%c0_1, %c0_2] : memref<4x64xf32, #tpu.memory_space<vmem>>, vector<4x64xf32>
    %cst = arith.constant dense<0.000000e+00> : vector<16x64xf32>
    %2 = tpu.matmul %0, %1, %cst {dimension_numbers = #tpu.dot_dimension_numbers<[1], [0], [0], [1], [0, 0, 1, 1], [], []>, precision = #tpu.contract_precision<fp32>} : vector<16x4xf32>, vector<4x64xf32>, vector<16x64xf32> -> vector<16x64xf32>
    %c0_3 = arith.constant 0 : index
    %c0_4 = arith.constant 0 : index
    %3 = vector.load %arg2[%c0_3, %c0_4] : memref<1x64xf32, #tpu.memory_space<vmem>>, vector<1x64xf32>
    %4 = vector.broadcast %3 : vector<1x64xf32> to vector<16x64xf32>
    %5 = arith.addf %2, %4 : vector<16x64xf32>
    %cst_5 = arith.constant 0.000000e+00 : f32
    %6 = vector.broadcast %cst_5 : f32 to vector<16x64xf32>
    %7 = arith.maximumf %5, %6 : vector<16x64xf32>
    %c0_6 = arith.constant 0 : index
    %c0_7 = arith.constant 0 : index
    %8 = vector.load %arg3[%c0_6, %c0_7] : memref<64x6xf32, #tpu.memory_space<vmem>>, vector<64x6xf32>
    %cst_8 = arith.constant dense<0.000000e+00> : vector<16x6xf32>
    %9 = tpu.matmul %7, %8, %cst_8 {dimension_numbers = #tpu.dot_dimension_numbers<[1], [0], [0], [1], [0, 0, 1, 1], [], []>, precision = #tpu.contract_precision<fp32>} : vector<16x64xf32>, vector<64x6xf32>, vector<16x6xf32> -> vector<16x6xf32>
    %c0_9 = arith.constant 0 : index
    %c0_10 = arith.constant 0 : index
    %10 = vector.load %arg4[%c0_9, %c0_10] : memref<1x6xf32, #tpu.memory_space<vmem>>, vector<1x6xf32>
    %11 = vector.broadcast %10 : vector<1x6xf32> to vector<16x6xf32>
    %12 = arith.addf %9, %11 : vector<16x6xf32>
    %13 = vector.shape_cast %12 : vector<16x6xf32> to vector<2x8x6xf32>
    %14 = tpu.transpose %13, [0, 2, 1] : vector<2x8x6xf32> -> vector<2x6x8xf32>
    %15 = vector.extract_strided_slice %14 {offsets = [0, 0, 0], sizes = [2, 3, 8], strides = [1, 1, 1]} : vector<2x6x8xf32> to vector<2x3x8xf32>
    %16 = math.exp %15 : vector<2x3x8xf32>
    %17 = vector.extract_strided_slice %14 {offsets = [0, 3, 0], sizes = [2, 3, 8], strides = [1, 1, 1]} : vector<2x6x8xf32> to vector<2x3x8xf32>
    %18 = tpu.iota {dimensions = array<i32: 0>} : vector<8x8xi32>
    %19 = tpu.iota {dimensions = array<i32: 1>} : vector<8x8xi32>
    %20 = arith.cmpi eq, %18, %19 : vector<8x8xi32>
    %21 = vector.shape_cast %20 : vector<8x8xi1> to vector<1x1x8x8xi1>
    %c1_i32 = arith.constant 1 : i32
    %22 = vector.broadcast %c1_i32 : i32 to vector<8x8xi32>
    %23 = arith.addi %18, %22 : vector<8x8xi32>
    %24 = arith.cmpi eq, %19, %23 : vector<8x8xi32>
    %25 = vector.shape_cast %24 : vector<8x8xi1> to vector<1x1x8x8xi1>
    %c1_i32_11 = arith.constant 1 : i32
    %26 = vector.broadcast %c1_i32_11 : i32 to vector<8x8xi32>
    %27 = arith.addi %19, %26 : vector<8x8xi32>
    %28 = arith.cmpi eq, %18, %27 : vector<8x8xi32>
    %29 = vector.shape_cast %28 : vector<8x8xi1> to vector<1x1x8x8xi1>
    %30 = vector.shape_cast %16 : vector<2x3x8xf32> to vector<2x3x8x1xf32>
    %cst_12 = arith.constant 0.000000e+00 : f32
    %31 = vector.shape_cast %21 : vector<1x1x8x8xi1> to vector<1x1x8x8xi1>
    %32 = vector.broadcast %31 : vector<1x1x8x8xi1> to vector<2x3x8x8xi1>
    %33 = vector.shape_cast %30 : vector<2x3x8x1xf32> to vector<2x3x8x1xf32>
    %34 = vector.broadcast %33 : vector<2x3x8x1xf32> to vector<2x3x8x8xf32>
    %35 = vector.broadcast %cst_12 : f32 to vector<2x3x8x8xf32>
    %36 = arith.select %32, %34, %35 : vector<2x3x8x8xi1>, vector<2x3x8x8xf32>
    %37 = vector.shape_cast %17 : vector<2x3x8xf32> to vector<2x3x8x1xf32>
    %cst_13 = arith.constant 0.000000e+00 : f32
    %38 = vector.shape_cast %25 : vector<1x1x8x8xi1> to vector<1x1x8x8xi1>
    %39 = vector.broadcast %38 : vector<1x1x8x8xi1> to vector<2x3x8x8xi1>
    %40 = vector.shape_cast %37 : vector<2x3x8x1xf32> to vector<2x3x8x1xf32>
    %41 = vector.broadcast %40 : vector<2x3x8x1xf32> to vector<2x3x8x8xf32>
    %42 = vector.broadcast %cst_13 : f32 to vector<2x3x8x8xf32>
    %43 = arith.select %39, %41, %42 : vector<2x3x8x8xi1>, vector<2x3x8x8xf32>
    %44 = arith.addf %36, %43 : vector<2x3x8x8xf32>
    %45 = arith.mulf %44, %44 : vector<2x3x8x8xf32>
    %cst_14 = arith.constant dense<0.000000e+00> : vector<2x3x8xf32>
    %46 = vector.multi_reduction <add>, %45, %cst_14 [2] : vector<2x3x8x8xf32> to vector<2x3x8xf32>
    %cst_15 = arith.constant 1.000000e-03 : f32
    %47 = vector.broadcast %cst_15 : f32 to vector<2x3x8xf32>
    %48 = arith.addf %46, %47 : vector<2x3x8xf32>
    %49 = arith.mulf %16, %17 : vector<2x3x8xf32>
    %50 = vector.shape_cast %48 : vector<2x3x8xf32> to vector<2x3x8x1xf32>
    %cst_16 = arith.constant 0.000000e+00 : f32
    %51 = vector.shape_cast %21 : vector<1x1x8x8xi1> to vector<1x1x8x8xi1>
    %52 = vector.broadcast %51 : vector<1x1x8x8xi1> to vector<2x3x8x8xi1>
    %53 = vector.shape_cast %50 : vector<2x3x8x1xf32> to vector<2x3x8x1xf32>
    %54 = vector.broadcast %53 : vector<2x3x8x1xf32> to vector<2x3x8x8xf32>
    %55 = vector.broadcast %cst_16 : f32 to vector<2x3x8x8xf32>
    %56 = arith.select %52, %54, %55 : vector<2x3x8x8xi1>, vector<2x3x8x8xf32>
    %57 = vector.shape_cast %49 : vector<2x3x8xf32> to vector<2x3x8x1xf32>
    %cst_17 = arith.constant 0.000000e+00 : f32
    %58 = vector.shape_cast %25 : vector<1x1x8x8xi1> to vector<1x1x8x8xi1>
    %59 = vector.broadcast %58 : vector<1x1x8x8xi1> to vector<2x3x8x8xi1>
    %60 = vector.shape_cast %57 : vector<2x3x8x1xf32> to vector<2x3x8x1xf32>
    %61 = vector.broadcast %60 : vector<2x3x8x1xf32> to vector<2x3x8x8xf32>
    %62 = vector.broadcast %cst_17 : f32 to vector<2x3x8x8xf32>
    %63 = arith.select %59, %61, %62 : vector<2x3x8x8xi1>, vector<2x3x8x8xf32>
    %64 = arith.addf %56, %63 : vector<2x3x8x8xf32>
    %65 = vector.shape_cast %49 : vector<2x3x8xf32> to vector<2x3x1x8xf32>
    %cst_18 = arith.constant 0.000000e+00 : f32
    %66 = vector.shape_cast %29 : vector<1x1x8x8xi1> to vector<1x1x8x8xi1>
    %67 = vector.broadcast %66 : vector<1x1x8x8xi1> to vector<2x3x8x8xi1>
    %68 = vector.shape_cast %65 : vector<2x3x1x8xf32> to vector<2x3x1x8xf32>
    %69 = vector.broadcast %68 : vector<2x3x1x8xf32> to vector<2x3x8x8xf32>
    %70 = vector.broadcast %cst_18 : f32 to vector<2x3x8x8xf32>
    %71 = arith.select %67, %69, %70 : vector<2x3x8x8xi1>, vector<2x3x8x8xf32>
    %72 = arith.addf %64, %71 : vector<2x3x8x8xf32>
    %c0_19 = arith.constant 0 : index
    %c0_20 = arith.constant 0 : index
    %c0_21 = arith.constant 0 : index
    %c0_22 = arith.constant 0 : index
    %73 = vector.load %arg5[%c0_19, %c0_20, %c0_21, %c0_22] : memref<2x3x8x8xf32, #tpu.memory_space<vmem>>, vector<2x3x8x8xf32>
    tpu.vector_store %arg5[%c0_19, %c0_20, %c0_21, %c0_22], %36 {strides = array<i32>} : memref<2x3x8x8xf32, #tpu.memory_space<vmem>>, vector<2x3x8x8xf32>,
    %c0_23 = arith.constant 0 : index
    %c0_24 = arith.constant 0 : index
    %c0_25 = arith.constant 0 : index
    %c0_26 = arith.constant 0 : index
    %74 = vector.load %arg6[%c0_23, %c0_24, %c0_25, %c0_26] : memref<2x3x8x8xf32, #tpu.memory_space<vmem>>, vector<2x3x8x8xf32>
    tpu.vector_store %arg6[%c0_23, %c0_24, %c0_25, %c0_26], %44 {strides = array<i32>} : memref<2x3x8x8xf32, #tpu.memory_space<vmem>>, vector<2x3x8x8xf32>,
    %c0_27 = arith.constant 0 : index
    %c0_28 = arith.constant 0 : index
    %c0_29 = arith.constant 0 : index
    %c0_30 = arith.constant 0 : index
    %75 = vector.load %arg7[%c0_27, %c0_28, %c0_29, %c0_30] : memref<2x3x8x8xf32, #tpu.memory_space<vmem>>, vector<2x3x8x8xf32>
    tpu.vector_store %arg7[%c0_27, %c0_28, %c0_29, %c0_30], %72 {strides = array<i32>} : memref<2x3x8x8xf32, #tpu.memory_space<vmem>>, vector<2x3x8x8xf32>,
    return
  }
}

</mosaic_0001>

<llo_original>
// kernel: tpu_custom_call.1
$region0: #{tpu_custom_call.1}
  #allocation0 [shape = 'u32[]', space=smem, size = 0x4, offset = 0x4, fixed_abs, tag = 'smem constant byte address 0x4 - core index']
  #allocation1 [shape = 'u32[72,128]{1,0:T(1,128)}', space=vmem, size = 0x9000, scoped, tag = 'internal scratch']
  %s0 = inlined_call_operand.vmem [shape: f32[16,4], index: 0, kind: input, shape index: {}]
  %s1 = inlined_call_operand.vmem [shape: f32[4,64], index: 1, kind: input, shape index: {}]
  %s2 = inlined_call_operand.vmem [shape: f32[1,64], index: 2, kind: input, shape index: {}]
  %s3 = inlined_call_operand.vmem [shape: f32[64,6], index: 3, kind: input, shape index: {}]
  %s4 = inlined_call_operand.vmem [shape: f32[1,6], index: 4, kind: input, shape index: {}]
  %s5 = inlined_call_operand.hbm [shape: f32[2,3,8,8], index: 5, kind: output, shape index: {0}]
  %s6 = inlined_call_operand.hbm [shape: f32[2,3,8,8], index: 6, kind: output, shape index: {1}]
  %s7 = inlined_call_operand.hbm [shape: f32[2,3,8,8], index: 7, kind: output, shape index: {2}]
  %8 = xla_tuple %s5, %s6, %s7
  %s9 = sld [smem:[#allocation0]]
  $region46: #{tpu_custom_call.1} parent=0
    _
  %s11 = ssub.s32 1, %s9
  %s12 = scalar_select 0, %s11, %s9
  $region1: #{tpu_custom_call.1} parent=0
    #allocation2 [shape = 'u8[24576]{0}', space=vmem, size = 0x6000, scoped, tag = 'output window, operand 0, single buffered']
    #allocation3 [shape = 's32[1]{0}', space=sflag, size = 0x4, scoped, tag = 'scoped memory for tpu_custom_call.1']
    #allocation4 [shape = 'u8[24576]{0}', space=vmem, size = 0x6000, scoped, tag = 'output window, operand 1, single buffered']
    #allocation5 [shape = 's32[1]{0}', space=sflag, size = 0x4, scoped, tag = 'scoped memory for tpu_custom_call.1']
    #allocation6 [shape = 'u8[24576]{0}', space=vmem, size = 0x6000, scoped, tag = 'output window, operand 2, single buffered']
    %13 = vsyncpa [#allocation3], 0
    %14 = vsyncpa [#allocation5], 0
    // Predicated region
    $region2: #{tpu_custom_call.1} parent=1 // pred_check
      _
    $region3: #{tpu_custom_call.1} parent=1 // pred_check_branch
      %16 = sbr.rel (0) target = $region5
    $region4: #{tpu_custom_call.1} parent=1 // pred_region
      _
    $region5: #{tpu_custom_call.1} parent=1 // pred_fallthru
      _
    // Predicated region
    $region6: #{tpu_custom_call.1} parent=1 // pred_check
      _
    $region7: #{tpu_custom_call.1} parent=1 // pred_check_branch
      %18 = sbr.rel (0) target = $region9
    $region8: #{tpu_custom_call.1} parent=1 // pred_region
      _
    $region9: #{tpu_custom_call.1} parent=1 // pred_fallthru
      _
    // Predicated region
    $region10: #{tpu_custom_call.1} parent=1 // pred_check
      _
    $region11: #{tpu_custom_call.1} parent=1 // pred_check_branch
      %20 = sbr.rel (0) target = $region13
    $region12: #{tpu_custom_call.1} parent=1 // pred_region
      _
    $region13: #{tpu_custom_call.1} parent=1 // pred_fallthru
      _
    // Predicated region
    $region14: #{tpu_custom_call.1} parent=1 // pred_check
      _
    $region15: #{tpu_custom_call.1} parent=1 // pred_check_branch
      %22 = sbr.rel (0) target = $region17
    $region16: #{tpu_custom_call.1} parent=1 // pred_region
      _
    $region17: #{tpu_custom_call.1} parent=1 // pred_fallthru
      _
    // Predicated region
    $region18: #{tpu_custom_call.1} parent=1 // pred_check
      _
    $region19: #{tpu_custom_call.1} parent=1 // pred_check_branch
      %24 = sbr.rel (0) target = $region21
    $region20: #{tpu_custom_call.1} parent=1 // pred_region
      _
    $region21: #{tpu_custom_call.1} parent=1 // pred_fallthru
      _
    %v25 = vld [vmem:[%s0] sm:$0xff]
    %v26 = vld [vmem:[%s0 + $0x8] sm:$0xff]
    %v27 = vld [vmem:[%s1] sm:$0xf]
    %v28 = vld [vmem:[%s2] sm:$0x1]
    %v30 = vperm.slane %v28, 0
    %vm32 = vcmask 31744
    %v34 = vsel %vm32, %v25, 0
    %v37 = vsel %vm32, %v26, 0
    %vm39 = vcmask 1043456
    %v41 = vsel %vm39, %v27, 0
    %43 = vmatpush.msra.mxu0 0.0
    %44 = vmatpush.msra.mxu0 0.0
    %45 = vmatpush.msra.mxu0 0.0
    %46 = vmatpush.msra.mxu0 0.0
    %47 = vmatpush.msra.mxu0 0.0
    %48 = vmatpush.msra.mxu0 0.0
    %49 = vmatpush.msra.mxu0 0.0
    %50 = vmatpush.msra.mxu0 0.0
    %51 = vmatpush.msra.mxu0 0.0
    %52 = vmatpush.msra.mxu0 0.0
    %53 = vmatpush.msra.mxu0 0.0
    %54 = vmatpush.msra.mxu0 0.0
    %55 = vmatpush.msra.mxu0 0.0
    %56 = vmatpush.msra.mxu0 0.0
    %57 = vmatpush.msra.mxu0 0.0
    %v58 = vand.u32 %v41, 4294901760
    %59 = vmatpush.msra.mxu0 %v58
    %v60 = vand.u32 %v34, 4294901760
    %v61 = vsub.f32 %v34, %v60
    %v62 = vand.u32 %v61, 4294901760
    %v63 = vsub.f32 %v61, %v62
    %v64 = vand.u32 %v63, 4294901760
    %65 = vmatmul.f32.gmra.mxu0 %v64
    %v66 = vpop.f32.mrf.mxu0
    %v67 = vadd.f32 %v30, %v66
    %v68 = vand.u32 %v37, 4294901760
    %v69 = vsub.f32 %v37, %v68
    %v70 = vand.u32 %v69, 4294901760
    %v71 = vsub.f32 %v69, %v70
    %v72 = vand.u32 %v71, 4294901760
    %73 = vmatmul.f32.gmra.mxu0 %v72
    %v74 = vpop.f32.mrf.mxu0
    %v75 = vadd.f32 %v30, %v74
    %76 = vdwg.mxu0
    %77 = vmatpush.msra.mxu0 0.0
    %78 = vmatpush.msra.mxu0 0.0
    %79 = vmatpush.msra.mxu0 0.0
    %80 = vmatpush.msra.mxu0 0.0
    %81 = vmatpush.msra.mxu0 0.0
    %82 = vmatpush.msra.mxu0 0.0
    %83 = vmatpush.msra.mxu0 0.0
    %84 = vmatpush.msra.mxu0 0.0
    %85 = vmatpush.msra.mxu0 0.0
    %86 = vmatpush.msra.mxu0 0.0
    %87 = vmatpush.msra.mxu0 0.0
    %88 = vmatpush.msra.mxu0 0.0
    %89 = vmatpush.msra.mxu0 0.0
    %90 = vmatpush.msra.mxu0 0.0
    %91 = vmatpush.msra.mxu0 0.0
    %v92 = vand.u32 %v41, 4294901760
    %v93 = vsub.f32 %v41, %v92
    %v94 = vand.u32 %v93, 4294901760
    %v95 = vsub.f32 %v93, %v94
    %v96 = vand.u32 %v95, 4294901760
    %97 = vmatpush.msra.mxu0 %v96
    %v98 = vand.u32 %v34, 4294901760
    %99 = vmatmul.f32.gmra.mxu0 %v98
    %v100 = vpop.f32.mrf.mxu0
    %v101 = vadd.f32 %v67, %v100
    %v102 = vand.u32 %v37, 4294901760
    %103 = vmatmul.f32.gmra.mxu0 %v102
    %v104 = vpop.f32.mrf.mxu0
    %v105 = vadd.f32 %v75, %v104
    %106 = vdwg.mxu0
    %107 = vmatpush.msra.mxu0 0.0
    %108 = vmatpush.msra.mxu0 0.0
    %109 = vmatpush.msra.mxu0 0.0
    %110 = vmatpush.msra.mxu0 0.0
    %111 = vmatpush.msra.mxu0 0.0
    %112 = vmatpush.msra.mxu0 0.0
    %113 = vmatpush.msra.mxu0 0.0
    %114 = vmatpush.msra.mxu0 0.0
    %115 = vmatpush.msra.mxu0 0.0
    %116 = vmatpush.msra.mxu0 0.0
    %117 = vmatpush.msra.mxu0 0.0
    %118 = vmatpush.msra.mxu0 0.0
    %119 = vmatpush.msra.mxu0 0.0
    %120 = vmatpush.msra.mxu0 0.0
    %121 = vmatpush.msra.mxu0 0.0
    %v122 = vand.u32 %v41, 4294901760
    %v123 = vsub.f32 %v41, %v122
    %124 = vmatpush.msra.mxu0 %v123
    %v125 = vand.u32 %v34, 4294901760
    %v126 = vsub.f32 %v34, %v125
    %127 = vmatmul.f32.gmra.mxu0 %v126
    %v128 = vpop.f32.mrf.mxu0
    %v129 = vadd.f32 %v101, %v128
    %v130 = vand.u32 %v37, 4294901760
    %v131 = vsub.f32 %v37, %v130
    %132 = vmatmul.f32.gmra.mxu0 %v131
    %v133 = vpop.f32.mrf.mxu0
    %v134 = vadd.f32 %v105, %v133
    %135 = vdwg.mxu0
    %136 = vmatpush.msra.mxu0 0.0
    %137 = vmatpush.msra.mxu0 0.0
    %138 = vmatpush.msra.mxu0 0.0
    %139 = vmatpush.msra.mxu0 0.0
    %140 = vmatpush.msra.mxu0 0.0
    %141 = vmatpush.msra.mxu0 0.0
    %142 = vmatpush.msra.mxu0 0.0
    %143 = vmatpush.msra.mxu0 0.0
    %144 = vmatpush.msra.mxu0 0.0
    %145 = vmatpush.msra.mxu0 0.0
    %146 = vmatpush.msra.mxu0 0.0
    %147 = vmatpush.msra.mxu0 0.0
    %148 = vmatpush.msra.mxu0 0.0
    %149 = vmatpush.msra.mxu0 0.0
    %150 = vmatpush.msra.mxu0 0.0
    %v151 = vand.u32 %v41, 4294901760
    %152 = vmatpush.msra.mxu0 %v151
    %v153 = vand.u32 %v34, 4294901760
    %v154 = vsub.f32 %v34, %v153
    %v155 = vand.u32 %v154, 4294901760
    %156 = vmatmul.f32.gmra.mxu0 %v155
    %v157 = vpop.f32.mrf.mxu0
    %v158 = vadd.f32 %v129, %v157
    %v159 = vand.u32 %v37, 4294901760
    %v160 = vsub.f32 %v37, %v159
    %v161 = vand.u32 %v160, 4294901760
    %162 = vmatmul.f32.gmra.mxu0 %v161
    %v163 = vpop.f32.mrf.mxu0
    %v164 = vadd.f32 %v134, %v163
    %165 = vdwg.mxu0
    %166 = vmatpush.msra.mxu0 0.0
    %167 = vmatpush.msra.mxu0 0.0
    %168 = vmatpush.msra.mxu0 0.0
    %169 = vmatpush.msra.mxu0 0.0
    %170 = vmatpush.msra.mxu0 0.0
    %171 = vmatpush.msra.mxu0 0.0
    %172 = vmatpush.msra.mxu0 0.0
    %173 = vmatpush.msra.mxu0 0.0
    %174 = vmatpush.msra.mxu0 0.0
    %175 = vmatpush.msra.mxu0 0.0
    %176 = vmatpush.msra.mxu0 0.0
    %177 = vmatpush.msra.mxu0 0.0
    %178 = vmatpush.msra.mxu0 0.0
    %179 = vmatpush.msra.mxu0 0.0
    %180 = vmatpush.msra.mxu0 0.0
    %v181 = vand.u32 %v41, 4294901760
    %v182 = vsub.f32 %v41, %v181
    %v183 = vand.u32 %v182, 4294901760
    %184 = vmatpush.msra.mxu0 %v183
    %v185 = vand.u32 %v34, 4294901760
    %186 = vmatmul.f32.gmra.mxu0 %v185
    %v187 = vpop.f32.mrf.mxu0
    %v188 = vadd.f32 %v158, %v187
    %v189 = vand.u32 %v37, 4294901760
    %190 = vmatmul.f32.gmra.mxu0 %v189
    %v191 = vpop.f32.mrf.mxu0
    %v192 = vadd.f32 %v164, %v191
    %193 = vdwg.mxu0
    %194 = vmatpush.msra.mxu0 0.0
    %195 = vmatpush.msra.mxu0 0.0
    %196 = vmatpush.msra.mxu0 0.0
    %197 = vmatpush.msra.mxu0 0.0
    %198 = vmatpush.msra.mxu0 0.0
    %199 = vmatpush.msra.mxu0 0.0
    %200 = vmatpush.msra.mxu0 0.0
    %201 = vmatpush.msra.mxu0 0.0
    %202 = vmatpush.msra.mxu0 0.0
    %203 = vmatpush.msra.mxu0 0.0
    %204 = vmatpush.msra.mxu0 0.0
    %205 = vmatpush.msra.mxu0 0.0
    %206 = vmatpush.msra.mxu0 0.0
    %207 = vmatpush.msra.mxu0 0.0
    %208 = vmatpush.msra.mxu0 0.0
    %v209 = vand.u32 %v41, 4294901760
    %210 = vmatpush.msra.mxu0 %v209
    %v211 = vand.u32 %v34, 4294901760
    %212 = vmatmul.f32.gmra.mxu0 %v211
    %v213 = vpop.f32.mrf.mxu0
    %v214 = vadd.f32 %v188, %v213
    %v215 = vand.u32 %v37, 4294901760
    %216 = vmatmul.f32.gmra.mxu0 %v215
    %v217 = vpop.f32.mrf.mxu0
    %v218 = vadd.f32 %v192, %v217
    %219 = vdwg.mxu0
    %v220 = vmax.f32 %v214, 0.0
    %v221 = vmax.f32 %v218, 0.0
    %v222 = vld [vmem:[%s3] sm:$0xff]
    %v223 = vld [vmem:[%s3 + $0x8] sm:$0xff]
    %v224 = vld [vmem:[%s3 + $0x10] sm:$0xff]
    %v225 = vld [vmem:[%s3 + $0x18] sm:$0xff]
    %v226 = vld [vmem:[%s3 + $0x20] sm:$0xff]
    %v227 = vld [vmem:[%s3 + $0x28] sm:$0xff]
    %v228 = vld [vmem:[%s3 + $0x30] sm:$0xff]
    %v229 = vld [vmem:[%s3 + $0x38] sm:$0xff]
    %v230 = vld [vmem:[%s4] sm:$0x1]
    %v232 = vperm.slane %v230, 0
    %vm234 = vcmask 523264
    %v236 = vsel %vm234, %v220, 0
    %v239 = vsel %vm234, %v221, 0
    %241 = vmatpush.msra.mxu0 0.0
    %242 = vmatpush.msra.mxu0 0.0
    %243 = vmatpush.msra.mxu0 0.0
    %244 = vmatpush.msra.mxu0 0.0
    %245 = vmatpush.msra.mxu0 0.0
    %246 = vmatpush.msra.mxu0 0.0
    %247 = vmatpush.msra.mxu0 0.0
    %248 = vmatpush.msra.mxu0 0.0
    %v249 = vand.u32 %v229, 4294901760
    %250 = vmatpush.msra.mxu0 %v249
    %v251 = vand.u32 %v228, 4294901760
    %252 = vmatpush.msra.mxu0 %v251
    %v253 = vand.u32 %v227, 4294901760
    %254 = vmatpush.msra.mxu0 %v253
    %v255 = vand.u32 %v226, 4294901760
    %256 = vmatpush.msra.mxu0 %v255
    %v257 = vand.u32 %v225, 4294901760
    %258 = vmatpush.msra.mxu0 %v257
    %v259 = vand.u32 %v224, 4294901760
    %260 = vmatpush.msra.mxu0 %v259
    %v261 = vand.u32 %v223, 4294901760
    %262 = vmatpush.msra.mxu0 %v261
    %v263 = vand.u32 %v222, 4294901760
    %264 = vmatpush.msra.mxu0 %v263
    %v265 = vand.u32 %v236, 4294901760
    %v266 = vsub.f32 %v236, %v265
    %v267 = vand.u32 %v266, 4294901760
    %v268 = vsub.f32 %v266, %v267
    %v269 = vand.u32 %v268, 4294901760
    %270 = vmatmul.f32.gmra.mxu0 %v269
    %v271 = vpop.f32.mrf.mxu0
    %v272 = vadd.f32 %v232, %v271
    %v273 = vand.u32 %v239, 4294901760
    %v274 = vsub.f32 %v239, %v273
    %v275 = vand.u32 %v274, 4294901760
    %v276 = vsub.f32 %v274, %v275
    %v277 = vand.u32 %v276, 4294901760
    %278 = vmatmul.f32.gmra.mxu0 %v277
    %v279 = vpop.f32.mrf.mxu0
    %v280 = vadd.f32 %v232, %v279
    %281 = vdwg.mxu0
    %282 = vmatpush.msra.mxu0 0.0
    %283 = vmatpush.msra.mxu0 0.0
    %284 = vmatpush.msra.mxu0 0.0
    %285 = vmatpush.msra.mxu0 0.0
    %286 = vmatpush.msra.mxu0 0.0
    %287 = vmatpush.msra.mxu0 0.0
    %288 = vmatpush.msra.mxu0 0.0
    %289 = vmatpush.msra.mxu0 0.0
    %v290 = vand.u32 %v229, 4294901760
    %v291 = vsub.f32 %v229, %v290
    %v292 = vand.u32 %v291, 4294901760
    %v293 = vsub.f32 %v291, %v292
    %v294 = vand.u32 %v293, 4294901760
    %295 = vmatpush.msra.mxu0 %v294
    %v296 = vand.u32 %v228, 4294901760
    %v297 = vsub.f32 %v228, %v296
    %v298 = vand.u32 %v297, 4294901760
    %v299 = vsub.f32 %v297, %v298
    %v300 = vand.u32 %v299, 4294901760
    %301 = vmatpush.msra.mxu0 %v300
    %v302 = vand.u32 %v227, 4294901760
    %v303 = vsub.f32 %v227, %v302
    %v304 = vand.u32 %v303, 4294901760
    %v305 = vsub.f32 %v303, %v304
    %v306 = vand.u32 %v305, 4294901760
    %307 = vmatpush.msra.mxu0 %v306
    %v308 = vand.u32 %v226, 4294901760
    %v309 = vsub.f32 %v226, %v308
    %v310 = vand.u32 %v309, 4294901760
    %v311 = vsub.f32 %v309, %v310
    %v312 = vand.u32 %v311, 4294901760
    %313 = vmatpush.msra.mxu0 %v312
    %v314 = vand.u32 %v225, 4294901760
    %v315 = vsub.f32 %v225, %v314
    %v316 = vand.u32 %v315, 4294901760
    %v317 = vsub.f32 %v315, %v316
    %v318 = vand.u32 %v317, 4294901760
    %319 = vmatpush.msra.mxu0 %v318
    %v320 = vand.u32 %v224, 4294901760
    %v321 = vsub.f32 %v224, %v320
    %v322 = vand.u32 %v321, 4294901760
    %v323 = vsub.f32 %v321, %v322
    %v324 = vand.u32 %v323, 4294901760
    %325 = vmatpush.msra.mxu0 %v324
    %v326 = vand.u32 %v223, 4294901760
    %v327 = vsub.f32 %v223, %v326
    %v328 = vand.u32 %v327, 4294901760
    %v329 = vsub.f32 %v327, %v328
    %v330 = vand.u32 %v329, 4294901760
    %331 = vmatpush.msra.mxu0 %v330
    %v332 = vand.u32 %v222, 4294901760
    %v333 = vsub.f32 %v222, %v332
    %v334 = vand.u32 %v333, 4294901760
    %v335 = vsub.f32 %v333, %v334
    %v336 = vand.u32 %v335, 4294901760
    %337 = vmatpush.msra.mxu0 %v336
    %v338 = vand.u32 %v236, 4294901760
    %339 = vmatmul.f32.gmra.mxu0 %v338
    %v340 = vpop.f32.mrf.mxu0
    %v341 = vadd.f32 %v272, %v340
    %v342 = vand.u32 %v239, 4294901760
    %343 = vmatmul.f32.gmra.mxu0 %v342
    %v344 = vpop.f32.mrf.mxu0
    %v345 = vadd.f32 %v280, %v344
    %346 = vdwg.mxu0
    %347 = vmatpush.msra.mxu0 0.0
    %348 = vmatpush.msra.mxu0 0.0
    %349 = vmatpush.msra.mxu0 0.0
    %350 = vmatpush.msra.mxu0 0.0
    %351 = vmatpush.msra.mxu0 0.0
    %352 = vmatpush.msra.mxu0 0.0
    %353 = vmatpush.msra.mxu0 0.0
    %354 = vmatpush.msra.mxu0 0.0
    %v355 = vand.u32 %v229, 4294901760
    %v356 = vsub.f32 %v229, %v355
    %357 = vmatpush.msra.mxu0 %v356
    %v358 = vand.u32 %v228, 4294901760
    %v359 = vsub.f32 %v228, %v358
    %360 = vmatpush.msra.mxu0 %v359
    %v361 = vand.u32 %v227, 4294901760
    %v362 = vsub.f32 %v227, %v361
    %363 = vmatpush.msra.mxu0 %v362
    %v364 = vand.u32 %v226, 4294901760
    %v365 = vsub.f32 %v226, %v364
    %366 = vmatpush.msra.mxu0 %v365
    %v367 = vand.u32 %v225, 4294901760
    %v368 = vsub.f32 %v225, %v367
    %369 = vmatpush.msra.mxu0 %v368
    %v370 = vand.u32 %v224, 4294901760
    %v371 = vsub.f32 %v224, %v370
    %372 = vmatpush.msra.mxu0 %v371
    %v373 = vand.u32 %v223, 4294901760
    %v374 = vsub.f32 %v223, %v373
    %375 = vmatpush.msra.mxu0 %v374
    %v376 = vand.u32 %v222, 4294901760
    %v377 = vsub.f32 %v222, %v376
    %378 = vmatpush.msra.mxu0 %v377
    %v379 = vand.u32 %v236, 4294901760
    %v380 = vsub.f32 %v236, %v379
    %381 = vmatmul.f32.gmra.mxu0 %v380
    %v382 = vpop.f32.mrf.mxu0
    %v383 = vadd.f32 %v341, %v382
    %v384 = vand.u32 %v239, 4294901760
    %v385 = vsub.f32 %v239, %v384
    %386 = vmatmul.f32.gmra.mxu0 %v385
    %v387 = vpop.f32.mrf.mxu0
    %v388 = vadd.f32 %v345, %v387
    %389 = vdwg.mxu0
    %390 = vmatpush.msra.mxu0 0.0
    %391 = vmatpush.msra.mxu0 0.0
    %392 = vmatpush.msra.mxu0 0.0
    %393 = vmatpush.msra.mxu0 0.0
    %394 = vmatpush.msra.mxu0 0.0
    %395 = vmatpush.msra.mxu0 0.0
    %396 = vmatpush.msra.mxu0 0.0
    %397 = vmatpush.msra.mxu0 0.0
    %v398 = vand.u32 %v229, 4294901760
    %399 = vmatpush.msra.mxu0 %v398
    %v400 = vand.u32 %v228, 4294901760
    %401 = vmatpush.msra.mxu0 %v400
    %v402 = vand.u32 %v227, 4294901760
    %403 = vmatpush.msra.mxu0 %v402
    %v404 = vand.u32 %v226, 4294901760
    %405 = vmatpush.msra.mxu0 %v404
    %v406 = vand.u32 %v225, 4294901760
    %407 = vmatpush.msra.mxu0 %v406
    %v408 = vand.u32 %v224, 4294901760
    %409 = vmatpush.msra.mxu0 %v408
    %v410 = vand.u32 %v223, 4294901760
    %411 = vmatpush.msra.mxu0 %v410
    %v412 = vand.u32 %v222, 4294901760
    %413 = vmatpush.msra.mxu0 %v412
    %v414 = vand.u32 %v236, 4294901760
    %v415 = vsub.f32 %v236, %v414
    %v416 = vand.u32 %v415, 4294901760
    %417 = vmatmul.f32.gmra.mxu0 %v416
    %v418 = vpop.f32.mrf.mxu0
    %v419 = vadd.f32 %v383, %v418
    %v420 = vand.u32 %v239, 4294901760
    %v421 = vsub.f32 %v239, %v420
    %v422 = vand.u32 %v421, 4294901760
    %423 = vmatmul.f32.gmra.mxu0 %v422
    %v424 = vpop.f32.mrf.mxu0
    %v425 = vadd.f32 %v388, %v424
    %426 = vdwg.mxu0
    %427 = vmatpush.msra.mxu0 0.0
    %428 = vmatpush.msra.mxu0 0.0
    %429 = vmatpush.msra.mxu0 0.0
    %430 = vmatpush.msra.mxu0 0.0
    %431 = vmatpush.msra.mxu0 0.0
    %432 = vmatpush.msra.mxu0 0.0
    %433 = vmatpush.msra.mxu0 0.0
    %434 = vmatpush.msra.mxu0 0.0
    %v435 = vand.u32 %v229, 4294901760
    %v436 = vsub.f32 %v229, %v435
    %v437 = vand.u32 %v436, 4294901760
    %438 = vmatpush.msra.mxu0 %v437
    %v439 = vand.u32 %v228, 4294901760
    %v440 = vsub.f32 %v228, %v439
    %v441 = vand.u32 %v440, 4294901760
    %442 = vmatpush.msra.mxu0 %v441
    %v443 = vand.u32 %v227, 4294901760
    %v444 = vsub.f32 %v227, %v443
    %v445 = vand.u32 %v444, 4294901760
    %446 = vmatpush.msra.mxu0 %v445
    %v447 = vand.u32 %v226, 4294901760
    %v448 = vsub.f32 %v226, %v447
    %v449 = vand.u32 %v448, 4294901760
    %450 = vmatpush.msra.mxu0 %v449
    %v451 = vand.u32 %v225, 4294901760
    %v452 = vsub.f32 %v225, %v451
    %v453 = vand.u32 %v452, 4294901760
    %454 = vmatpush.msra.mxu0 %v453
    %v455 = vand.u32 %v224, 4294901760
    %v456 = vsub.f32 %v224, %v455
    %v457 = vand.u32 %v456, 4294901760
    %458 = vmatpush.msra.mxu0 %v457
    %v459 = vand.u32 %v223, 4294901760
    %v460 = vsub.f32 %v223, %v459
    %v461 = vand.u32 %v460, 4294901760
    %462 = vmatpush.msra.mxu0 %v461
    %v463 = vand.u32 %v222, 4294901760
    %v464 = vsub.f32 %v222, %v463
    %v465 = vand.u32 %v464, 4294901760
    %466 = vmatpush.msra.mxu0 %v465
    %v467 = vand.u32 %v236, 4294901760
    %468 = vmatmul.f32.gmra.mxu0 %v467
    %v469 = vpop.f32.mrf.mxu0
    %v470 = vadd.f32 %v419, %v469
    %v471 = vand.u32 %v239, 4294901760
    %472 = vmatmul.f32.gmra.mxu0 %v471
    %v473 = vpop.f32.mrf.mxu0
    %v474 = vadd.f32 %v425, %v473
    %475 = vdwg.mxu0
    %476 = vmatpush.msra.mxu0 0.0
    %477 = vmatpush.msra.mxu0 0.0
    %478 = vmatpush.msra.mxu0 0.0
    %479 = vmatpush.msra.mxu0 0.0
    %480 = vmatpush.msra.mxu0 0.0
    %481 = vmatpush.msra.mxu0 0.0
    %482 = vmatpush.msra.mxu0 0.0
    %483 = vmatpush.msra.mxu0 0.0
    %v484 = vand.u32 %v229, 4294901760
    %485 = vmatpush.msra.mxu0 %v484
    %v486 = vand.u32 %v228, 4294901760
    %487 = vmatpush.msra.mxu0 %v486
    %v488 = vand.u32 %v227, 4294901760
    %489 = vmatpush.msra.mxu0 %v488
    %v490 = vand.u32 %v226, 4294901760
    %491 = vmatpush.msra.mxu0 %v490
    %v492 = vand.u32 %v225, 4294901760
    %493 = vmatpush.msra.mxu0 %v492
    %v494 = vand.u32 %v224, 4294901760
    %495 = vmatpush.msra.mxu0 %v494
    %v496 = vand.u32 %v223, 4294901760
    %497 = vmatpush.msra.mxu0 %v496
    %v498 = vand.u32 %v222, 4294901760
    %499 = vmatpush.msra.mxu0 %v498
    %v500 = vand.u32 %v236, 4294901760
    %501 = vmatmul.f32.gmra.mxu0 %v500
    %v502 = vpop.f32.mrf.mxu0
    %v503 = vadd.f32 %v470, %v502
    %v504 = vand.u32 %v239, 4294901760
    %505 = vmatmul.f32.gmra.mxu0 %v504
    %v506 = vpop.f32.mrf.mxu0
    %v507 = vadd.f32 %v474, %v506
    %508 = vdwg.mxu0
    %509 = vxpose.xlu0.b32.start [1/16] %v503, 128
    %510 = vxpose.xlu0.b32.cont [2/16] 0.0, 128
    %511 = vxpose.xlu0.b32.cont [3/16] 0.0, 128
    %512 = vxpose.xlu0.b32.cont [4/16] 0.0, 128
    %513 = vxpose.xlu0.b32.cont [5/16] 0.0, 128
    %514 = vxpose.xlu0.b32.cont [6/16] 0.0, 128
    %515 = vxpose.xlu0.b32.cont [7/16] 0.0, 128
    %516 = vxpose.xlu0.b32.cont [8/16] 0.0, 128
    %517 = vxpose.xlu0.b32.cont [9/16] 0.0, 128
    %518 = vxpose.xlu0.b32.cont [10/16] 0.0, 128
    %519 = vxpose.xlu0.b32.cont [11/16] 0.0, 128
    %520 = vxpose.xlu0.b32.cont [12/16] 0.0, 128
    %521 = vxpose.xlu0.b32.cont [13/16] 0.0, 128
    %522 = vxpose.xlu0.b32.cont [14/16] 0.0, 128
    %523 = vxpose.xlu0.b32.cont [15/16] 0.0, 128
    %524 = vxpose.xlu0.b32.end [16/16] 0.0, 128
    %v525 = vpop.trf.xlu0
    %v526 = vpop.trf.xlu0
    %v527 = vpop.trf.xlu0
    %v528 = vpop.trf.xlu0
    %v529 = vpop.trf.xlu0
    %v530 = vpop.trf.xlu0
    %v531 = vpop.trf.xlu0
    %v532 = vpop.trf.xlu0
    %v533 = vpop.trf.xlu0
    %v534 = vpop.trf.xlu0
    %v535 = vpop.trf.xlu0
    %v536 = vpop.trf.xlu0
    %v537 = vpop.trf.xlu0
    %v538 = vpop.trf.xlu0
    %v539 = vpop.trf.xlu0
    %v540 = vpop.trf.xlu0
    %541 = vxpose.xlu0.b32.start [1/16] %v507, 128
    %542 = vxpose.xlu0.b32.cont [2/16] 0.0, 128
    %543 = vxpose.xlu0.b32.cont [3/16] 0.0, 128
    %544 = vxpose.xlu0.b32.cont [4/16] 0.0, 128
    %545 = vxpose.xlu0.b32.cont [5/16] 0.0, 128
    %546 = vxpose.xlu0.b32.cont [6/16] 0.0, 128
    %547 = vxpose.xlu0.b32.cont [7/16] 0.0, 128
    %548 = vxpose.xlu0.b32.cont [8/16] 0.0, 128
    %549 = vxpose.xlu0.b32.cont [9/16] 0.0, 128
    %550 = vxpose.xlu0.b32.cont [10/16] 0.0, 128
    %551 = vxpose.xlu0.b32.cont [11/16] 0.0, 128
    %552 = vxpose.xlu0.b32.cont [12/16] 0.0, 128
    %553 = vxpose.xlu0.b32.cont [13/16] 0.0, 128
    %554 = vxpose.xlu0.b32.cont [14/16] 0.0, 128
    %555 = vxpose.xlu0.b32.cont [15/16] 0.0, 128
    %556 = vxpose.xlu0.b32.end [16/16] 0.0, 128
    %v557 = vpop.trf.xlu0
    %v558 = vpop.trf.xlu0
    %v559 = vpop.trf.xlu0
    %v560 = vpop.trf.xlu0
    %v561 = vpop.trf.xlu0
    %v562 = vpop.trf.xlu0
    %v563 = vpop.trf.xlu0
    %v564 = vpop.trf.xlu0
    %v565 = vpop.trf.xlu0
    %v566 = vpop.trf.xlu0
    %v567 = vpop.trf.xlu0
    %v568 = vpop.trf.xlu0
    %v569 = vpop.trf.xlu0
    %v570 = vpop.trf.xlu0
    %v571 = vpop.trf.xlu0
    %v572 = vpop.trf.xlu0
    %v573 = vmul.f32 %v525, 1.442695
    %v574 = vpow.pop %v573
    %v575 = vmul.f32 %v557, 1.442695
    %v576 = vpow.pop %v575
    %v577 = vlaneseq
    %v578 = vshrl.u32 %v577, 7
    %v579 = vlaneseq
    %v580 = vand.u32 %v579, 127
    %vm581 = vcmp.eq.s32.totalorder %v578, %v580
    %v582 = vadd.s32 %v578, 1
    %vm583 = vcmp.eq.s32.totalorder %v580, %v582
    %v584 = vadd.s32 %v580, 1
    %vm585 = vcmp.eq.s32.totalorder %v578, %v584
    %v586 = vperm.slane %v574, 0
    %v587 = vlaneseq
    %v588 = vshrl.u32 %v587, 7
    %590 = vset.pattern.permute.xlu0 %v588
    %591 = vperm.xlu0 %590, %v586
    %v592 = vpop.permute.xlu0 %591
    %v593 = vperm.slane %v574, 1
    %v594 = vlaneseq
    %v595 = vshrl.u32 %v594, 7
    %597 = vset.pattern.permute.xlu0 %v595
    %598 = vperm.xlu0 %597, %v593
    %v599 = vpop.permute.xlu0 %598
    %v600 = vperm.slane %v574, 2
    %v601 = vlaneseq
    %v602 = vshrl.u32 %v601, 7
    %604 = vset.pattern.permute.xlu0 %v602
    %605 = vperm.xlu0 %604, %v600
    %v606 = vpop.permute.xlu0 %605
    %v607 = vperm.slane %v576, 0
    %v608 = vlaneseq
    %v609 = vshrl.u32 %v608, 7
    %611 = vset.pattern.permute.xlu0 %v609
    %612 = vperm.xlu0 %611, %v607
    %v613 = vpop.permute.xlu0 %612
    %v614 = vperm.slane %v576, 1
    %v615 = vlaneseq
    %v616 = vshrl.u32 %v615, 7
    %618 = vset.pattern.permute.xlu0 %v616
    %619 = vperm.xlu0 %618, %v614
    %v620 = vpop.permute.xlu0 %619
    %v621 = vperm.slane %v576, 2
    %v622 = vlaneseq
    %v623 = vshrl.u32 %v622, 7
    %625 = vset.pattern.permute.xlu0 %v623
    %626 = vperm.xlu0 %625, %v621
    %v627 = vpop.permute.xlu0 %626
    %v628 = vsel %vm581, 1, 0
    %vm629 = vcmp.eq.s32.totalorder %v628, 1
    %v630 = vsel %vm629, %v592, 0.0
    %v631 = vsel %vm629, %v599, 0.0
    %v632 = vsel %vm629, %v606, 0.0
    %v633 = vsel %vm629, %v613, 0.0
    %v634 = vsel %vm629, %v620, 0.0
    %v635 = vsel %vm629, %v627, 0.0
    %v636 = vperm.slane %v525, 3
    %v637 = vlaneseq
    %v638 = vshrl.u32 %v637, 7
    %640 = vset.pattern.permute.xlu0 %v638
    %641 = vperm.xlu0 %640, %v636
    %v642 = vpop.permute.xlu0 %641
    %v643 = vperm.slane %v525, 4
    %v644 = vlaneseq
    %v645 = vshrl.u32 %v644, 7
    %647 = vset.pattern.permute.xlu0 %v645
    %648 = vperm.xlu0 %647, %v643
    %v649 = vpop.permute.xlu0 %648
    %v650 = vperm.slane %v525, 5
    %v651 = vlaneseq
    %v652 = vshrl.u32 %v651, 7
    %654 = vset.pattern.permute.xlu0 %v652
    %655 = vperm.xlu0 %654, %v650
    %v656 = vpop.permute.xlu0 %655
    %v657 = vperm.slane %v557, 3
    %v658 = vlaneseq
    %v659 = vshrl.u32 %v658, 7
    %661 = vset.pattern.permute.xlu0 %v659
    %662 = vperm.xlu0 %661, %v657
    %v663 = vpop.permute.xlu0 %662
    %v664 = vperm.slane %v557, 4
    %v665 = vlaneseq
    %v666 = vshrl.u32 %v665, 7
    %668 = vset.pattern.permute.xlu0 %v666
    %669 = vperm.xlu0 %668, %v664
    %v670 = vpop.permute.xlu0 %669
    %v671 = vperm.slane %v557, 5
    %v672 = vlaneseq
    %v673 = vshrl.u32 %v672, 7
    %675 = vset.pattern.permute.xlu0 %v673
    %676 = vperm.xlu0 %675, %v671
    %v677 = vpop.permute.xlu0 %676
    %v678 = vsel %vm583, 1, 0
    %vm679 = vcmp.eq.s32.totalorder %v678, 1
    %v680 = vsel %vm679, %v642, 0.0
    %v681 = vsel %vm679, %v649, 0.0
    %v682 = vsel %vm679, %v656, 0.0
    %v683 = vsel %vm679, %v663, 0.0
    %v684 = vsel %vm679, %v670, 0.0
    %v685 = vsel %vm679, %v677, 0.0
    %v686 = vadd.f32 %v630, %v680
    %v687 = vadd.f32 %v631, %v681
    %v688 = vadd.f32 %v632, %v682
    %v689 = vadd.f32 %v633, %v683
    %v690 = vadd.f32 %v634, %v684
    %v691 = vadd.f32 %v635, %v685
    %v692 = vmul.f32 %v686, %v686
    %v693 = vmul.f32 %v687, %v687
    %v694 = vmul.f32 %v688, %v688
    %v695 = vmul.f32 %v689, %v689
    %v696 = vmul.f32 %v690, %v690
    %v697 = vmul.f32 %v691, %v691
    %vm698 = vcmask 64512
    %v699 = vsel %vm698, %v692, 0.0
    %v700 = vrot.slane %v699, 4
    %v701 = vadd.f32 %v699, %v700
    %v702 = vrot.slane %v701, 2
    %v703 = vadd.f32 %v701, %v702
    %v704 = vrot.slane %v703, 1
    %v705 = vadd.f32 %v703, %v704
    %v706 = vsel %vm698, %v693, 0.0
    %v707 = vrot.slane %v706, 4
    %v708 = vadd.f32 %v706, %v707
    %v709 = vrot.slane %v708, 2
    %v710 = vadd.f32 %v708, %v709
    %v711 = vrot.slane %v710, 1
    %v712 = vadd.f32 %v710, %v711
    %v713 = vsel %vm698, %v694, 0.0
    %v714 = vrot.slane %v713, 4
    %v715 = vadd.f32 %v713, %v714
    %v716 = vrot.slane %v715, 2
    %v717 = vadd.f32 %v715, %v716
    %v718 = vrot.slane %v717, 1
    %v719 = vadd.f32 %v717, %v718
    %v720 = vsel %vm698, %v695, 0.0
    %v721 = vrot.slane %v720, 4
    %v722 = vadd.f32 %v720, %v721
    %v723 = vrot.slane %v722, 2
    %v724 = vadd.f32 %v722, %v723
    %v725 = vrot.slane %v724, 1
    %v726 = vadd.f32 %v724, %v725
    %v727 = vsel %vm698, %v696, 0.0
    %v728 = vrot.slane %v727, 4
    %v729 = vadd.f32 %v727, %v728
    %v730 = vrot.slane %v729, 2
    %v731 = vadd.f32 %v729, %v730
    %v732 = vrot.slane %v731, 1
    %v733 = vadd.f32 %v731, %v732
    %v734 = vsel %vm698, %v697, 0.0
    %v735 = vrot.slane %v734, 4
    %v736 = vadd.f32 %v734, %v735
    %v737 = vrot.slane %v736, 2
    %v738 = vadd.f32 %v736, %v737
    %v739 = vrot.slane %v738, 1
    %v740 = vadd.f32 %v738, %v739
    %v741 = vadd.f32 %v705, 0.001
    %v742 = vadd.f32 %v712, 0.001
    %v743 = vadd.f32 %v719, 0.001
    %v744 = vadd.f32 %v726, 0.001
    %v745 = vadd.f32 %v733, 0.001
    %v746 = vadd.f32 %v740, 0.001
    %v749 = vrot.slane %v525, 3
    %v750 = vrot.slane %v557, 3
    %v753 = vmul.f32 %v574, %v749
    %v754 = vmul.f32 %v576, %v750
    %v755 = vlaneseq
    %v756 = vshrl.u32 %v755, 7
    %758 = vset.pattern.permute.xlu0 %v756
    %759 = vperm.xlu0 %758, %v741
    %v760 = vpop.permute.xlu0 %759
    %v761 = vlaneseq
    %v762 = vshrl.u32 %v761, 7
    %764 = vset.pattern.permute.xlu0 %v762
    %765 = vperm.xlu0 %764, %v742
    %v766 = vpop.permute.xlu0 %765
    %v767 = vlaneseq
    %v768 = vshrl.u32 %v767, 7
    %770 = vset.pattern.permute.xlu0 %v768
    %771 = vperm.xlu0 %770, %v743
    %v772 = vpop.permute.xlu0 %771
    %v773 = vlaneseq
    %v774 = vshrl.u32 %v773, 7
    %776 = vset.pattern.permute.xlu0 %v774
    %777 = vperm.xlu0 %776, %v744
    %v778 = vpop.permute.xlu0 %777
    %v779 = vlaneseq
    %v780 = vshrl.u32 %v779, 7
    %782 = vset.pattern.permute.xlu0 %v780
    %783 = vperm.xlu0 %782, %v745
    %v784 = vpop.permute.xlu0 %783
    %v785 = vlaneseq
    %v786 = vshrl.u32 %v785, 7
    %788 = vset.pattern.permute.xlu0 %v786
    %789 = vperm.xlu0 %788, %v746
    %v790 = vpop.permute.xlu0 %789
    %v791 = vsel %vm629, %v760, 0.0
    %v792 = vsel %vm629, %v766, 0.0
    %v793 = vsel %vm629, %v772, 0.0
    %v794 = vsel %vm629, %v778, 0.0
    %v795 = vsel %vm629, %v784, 0.0
    %v796 = vsel %vm629, %v790, 0.0
    %v797 = vperm.slane %v753, 0
    %v798 = vlaneseq
    %v799 = vshrl.u32 %v798, 7
    %801 = vset.pattern.permute.xlu0 %v799
    %802 = vperm.xlu0 %801, %v797
    %v803 = vpop.permute.xlu0 %802
    %v804 = vperm.slane %v753, 1
    %v805 = vlaneseq
    %v806 = vshrl.u32 %v805, 7
    %808 = vset.pattern.permute.xlu0 %v806
    %809 = vperm.xlu0 %808, %v804
    %v810 = vpop.permute.xlu0 %809
    %v811 = vperm.slane %v753, 2
    %v812 = vlaneseq
    %v813 = vshrl.u32 %v812, 7
    %815 = vset.pattern.permute.xlu0 %v813
    %816 = vperm.xlu0 %815, %v811
    %v817 = vpop.permute.xlu0 %816
    %v818 = vperm.slane %v754, 0
    %v819 = vlaneseq
    %v820 = vshrl.u32 %v819, 7
    %822 = vset.pattern.permute.xlu0 %v820
    %823 = vperm.xlu0 %822, %v818
    %v824 = vpop.permute.xlu0 %823
    %v825 = vperm.slane %v754, 1
    %v826 = vlaneseq
    %v827 = vshrl.u32 %v826, 7
    %829 = vset.pattern.permute.xlu0 %v827
    %830 = vperm.xlu0 %829, %v825
    %v831 = vpop.permute.xlu0 %830
    %v832 = vperm.slane %v754, 2
    %v833 = vlaneseq
    %v834 = vshrl.u32 %v833, 7
    %836 = vset.pattern.permute.xlu0 %v834
    %837 = vperm.xlu0 %836, %v832
    %v838 = vpop.permute.xlu0 %837
    %v839 = vsel %vm679, %v803, 0.0
    %v840 = vsel %vm679, %v810, 0.0
    %v841 = vsel %vm679, %v817, 0.0
    %v842 = vsel %vm679, %v824, 0.0
    %v843 = vsel %vm679, %v831, 0.0
    %v844 = vsel %vm679, %v838, 0.0
    %v845 = vadd.f32 %v791, %v839
    %v846 = vadd.f32 %v792, %v840
    %v847 = vadd.f32 %v793, %v841
    %v848 = vadd.f32 %v794, %v842
    %v849 = vadd.f32 %v795, %v843
    %v850 = vadd.f32 %v796, %v844
    %v853 = vrot.slane %v753, 1
    %v854 = vrot.slane %v753, 2
    %v855 = vrot.slane %v754, 1
    %v856 = vrot.slane %v754, 2
    %v857 = vsel %vm585, 1, 0
    %vm858 = vcmp.eq.s32.totalorder %v857, 1
    %v859 = vperm.slane %v753, 0
    %v860 = vperm.slane %v853, 0
    %v861 = vperm.slane %v854, 0
    %v862 = vperm.slane %v754, 0
    %v863 = vperm.slane %v855, 0
    %v864 = vperm.slane %v856, 0
    %v871 = vsel %vm858, %v859, 0.0
    %v872 = vsel %vm858, %v860, 0.0
    %v873 = vsel %vm858, %v861, 0.0
    %v874 = vsel %vm858, %v862, 0.0
    %v875 = vsel %vm858, %v863, 0.0
    %v876 = vsel %vm858, %v864, 0.0
    %v877 = vadd.f32 %v845, %v871
    %v878 = vadd.f32 %v846, %v872
    %v879 = vadd.f32 %v847, %v873
    %v880 = vadd.f32 %v848, %v874
    %v881 = vadd.f32 %v849, %v875
    %v882 = vadd.f32 %v850, %v876
    %883 = vst.msk [vmem:[#allocation2] sm:$0xff] %vm698, %v630
    %884 = vst.msk [vmem:[#allocation2 + $0x8] sm:$0xff] %vm698, %v631
    %885 = vst.msk [vmem:[#allocation2 + $0x10] sm:$0xff] %vm698, %v632
    %886 = vst.msk [vmem:[#allocation2 + $0x18] sm:$0xff] %vm698, %v633
    %887 = vst.msk [vmem:[#allocation2 + $0x20] sm:$0xff] %vm698, %v634
    %888 = vst.msk [vmem:[#allocation2 + $0x28] sm:$0xff] %vm698, %v635
    %889 = vst.msk [vmem:[#allocation4] sm:$0xff] %vm698, %v686
    %890 = vst.msk [vmem:[#allocation4 + $0x8] sm:$0xff] %vm698, %v687
    %891 = vst.msk [vmem:[#allocation4 + $0x10] sm:$0xff] %vm698, %v688
    %892 = vst.msk [vmem:[#allocation4 + $0x18] sm:$0xff] %vm698, %v689
    %893 = vst.msk [vmem:[#allocation4 + $0x20] sm:$0xff] %vm698, %v690
    %894 = vst.msk [vmem:[#allocation4 + $0x28] sm:$0xff] %vm698, %v691
    %895 = vst.msk [vmem:[#allocation6] sm:$0xff] %vm698, %v877
    %896 = vst.msk [vmem:[#allocation6 + $0x8] sm:$0xff] %vm698, %v878
    %897 = vst.msk [vmem:[#allocation6 + $0x10] sm:$0xff] %vm698, %v879
    %898 = vst.msk [vmem:[#allocation6 + $0x18] sm:$0xff] %vm698, %v880
    %899 = vst.msk [vmem:[#allocation6 + $0x20] sm:$0xff] %vm698, %v881
    %900 = vst.msk [vmem:[#allocation6 + $0x28] sm:$0xff] %vm698, %v882
    // Predicated region
    $region22: #{tpu_custom_call.1} parent=1 // pred_check
      _
    $region23: #{tpu_custom_call.1} parent=1 // pred_check_branch
      %902 = sbr.rel (0) target = $region25
    $region24: #{tpu_custom_call.1} parent=1 // pred_region
      %904 = vsyncadd [#allocation3], 0
      %s905 = sshll.u32 [#allocation2], 4
      %s906 = int_to_ptr.vmem [resolvable:$true] %s905
      %s907 = sshll.u32 %s5, 4
      %s908 = int_to_ptr.hbm [resolvable:$true] %s907
      %913 = dma.vmem_to_hbm [thread:$0]  %s906, 768, %s908, [#allocation3], 128, 128, 8
    $region25: #{tpu_custom_call.1} parent=1 // pred_fallthru
      _
    // Predicated region
    $region26: #{tpu_custom_call.1} parent=1 // pred_check
      _
    $region27: #{tpu_custom_call.1} parent=1 // pred_check_branch
      %915 = sbr.rel (0) target = $region29
    $region28: #{tpu_custom_call.1} parent=1 // pred_region
      %917 = vsyncadd [#allocation5], 0
      %s918 = sshll.u32 [#allocation4], 4
      %s919 = int_to_ptr.vmem [resolvable:$true] %s918
      %s920 = sshll.u32 %s6, 4
      %s921 = int_to_ptr.hbm [resolvable:$true] %s920
      %926 = dma.vmem_to_hbm [thread:$0]  %s919, 768, %s921, [#allocation5], 128, 128, 8
    $region29: #{tpu_custom_call.1} parent=1 // pred_fallthru
      _
    // Predicated region
    $region30: #{tpu_custom_call.1} parent=1 // pred_check
      _
    $region31: #{tpu_custom_call.1} parent=1 // pred_check_branch
      %928 = sbr.rel (0) target = $region33
    $region32: #{tpu_custom_call.1} parent=1 // pred_region
      %930 = vsyncadd [#allocation5], 0
      %s931 = sshll.u32 [#allocation6], 4
      %s932 = int_to_ptr.vmem [resolvable:$true] %s931
      %s933 = sshll.u32 %s7, 4
      %s934 = int_to_ptr.hbm [resolvable:$true] %s933
      %939 = dma.vmem_to_hbm [thread:$0]  %s932, 768, %s934, [#allocation5], 128, 128, 8
    $region33: #{tpu_custom_call.1} parent=1 // pred_fallthru
      _
    // Predicated region
    $region34: #{tpu_custom_call.1} parent=1 // pred_check
      _
    $region35: #{tpu_custom_call.1} parent=1 // pred_check_branch
      %941 = sbr.rel (0) target = $region37
    $region36: #{tpu_custom_call.1} parent=1 // pred_region
      %943 = dma.done [#allocation3], 768
    $region37: #{tpu_custom_call.1} parent=1 // pred_fallthru
      _
    // Predicated region
    $region38: #{tpu_custom_call.1} parent=1 // pred_check
      _
    $region39: #{tpu_custom_call.1} parent=1 // pred_check_branch
      %945 = sbr.rel (0) target = $region41
    $region40: #{tpu_custom_call.1} parent=1 // pred_region
      %947 = dma.done [#allocation5], 768
    $region41: #{tpu_custom_call.1} parent=1 // pred_fallthru
      _
    // Predicated region
    $region42: #{tpu_custom_call.1} parent=1 // pred_check
      _
    $region43: #{tpu_custom_call.1} parent=1 // pred_check_branch
      %949 = sbr.rel (0) target = $region45
    $region44: #{tpu_custom_call.1} parent=1 // pred_region
      %951 = dma.done [#allocation5], 768
    $region45: #{tpu_custom_call.1} parent=1 // pred_fallthru
      _
    %952 = vsyncpa [#allocation3], 1
    %953 = vsyncpa [#allocation5], 1

</llo_original>
